<compile_context>
chip_gen: v7x
topology: tpu7x:2x2x1
jax: 0.10.0
libtpu: 0.0.40
codegen_flags: <defaults>
</compile_context>

<pallas_src>
import math

import jax
import jax.numpy as jnp
from jax.experimental import pallas as pl
from jax.experimental.pallas import tpu as pltpu


def _round_up(n, m):
    return ((n + m - 1) // m) * m


def _gelu_exact(x):
    # PyTorch nn.GELU default: 0.5 * x * (1 + erf(x / sqrt(2))).
    # TODO(synk): tanh-approx GELU would offload to the EUP slot (cheaper when
    # VPU-bound) but slightly changes numerics vs the PyTorch module.
    return 0.5 * x * (1.0 + jax.lax.erf(x * 0.7071067811865476))


def _vmem_limit_bytes():
    # Generation-aware budget: ~75% of physical VMEM (96 MiB on v5e/v6e's
    # 128 MiB, 48 MiB on v7x's 64 MiB). Conservative fallback if unqueryable.
    cap = 64 * 1024 * 1024
    try:
        cap = int(pltpu.get_tpu_info().vmem_capacity_bytes)
    except Exception:
        pass
    return max(32 * 1024 * 1024, min((cap * 3) // 4, 100 * 1024 * 1024))


def _const_spec(block_shape):
    # Operand with a constant index_map: resident across the whole grid.
    # Buffered(1) drops the pointless second pipeline buffer; fall back if
    # the running JAX does not expose pipeline_mode on BlockSpec.
    zeros = (0,) * len(block_shape)
    index_map = lambda i: zeros
    try:
        return pl.BlockSpec(block_shape, index_map, pipeline_mode=pl.Buffered(1))
    except Exception:
        return pl.BlockSpec(block_shape, index_map)


# ----------------------------------------------------------------------------
# Fused kernel: trunk + all group heads in one grid step per batch tile.
# Grid: (batch_tiles,)
# ----------------------------------------------------------------------------
def fused_kernel(x_ref, ws_ref, bs_ref, gamma_ref, beta_ref,
                 w1_ref, b1_ref, w2_ref, b2_ref, o_ref):
    # Shared trunk: Linear -> LayerNorm -> GELU (f32 math, bf16 MXU operands).
    h = jnp.dot(x_ref[...], ws_ref[...], preferred_element_type=jnp.float32)
    h = h + bs_ref[...]
    mu = jnp.mean(h, axis=-1, keepdims=True)
    var = jnp.mean((h - mu) * (h - mu), axis=-1, keepdims=True)
    hn = (h - mu) * jax.lax.rsqrt(var + 1e-5)          # eps = 1e-5 (PyTorch default)
    hn = hn * gamma_ref[...] + beta_ref[...]
    shared = _gelu_exact(hn).astype(jnp.bfloat16)

    # All group heads fused: first linear for every group in one wide dot.
    h1 = jnp.dot(shared, w1_ref[...], preferred_element_type=jnp.float32) + b1_ref[...]
    h1 = _gelu_exact(h1).astype(jnp.bfloat16)

    # Second linear for every group as one block-diagonal matmul into a packed,
    # lane-dense output slab (zeros outside each group's block contribute 0).
    y = jnp.dot(h1, w2_ref[...], preferred_element_type=jnp.float32) + b2_ref[...]
    o_ref[...] = y.astype(o_ref.dtype)


def fused_forward(x, ws, bs, gamma, beta, w1, b1, w2, b2, *, tb_max=256):
    B, D = x.shape
    H = ws.shape[1]
    GM = w1.shape[1]
    Sout = w2.shape[1]

    # Batch tile: multiple of 16 (bf16 sublane packing); prefer >= 2 tiles so
    # the "parallel" batch axis can shard across v7x's two TensorCores.
    TB = min(tb_max, _round_up(B, 16))
    if B >= 32 and _round_up(B, TB) // TB < 2:
        TB = _round_up(pl.cdiv(B, 2), 16)
    Bpad = _round_up(B, TB)

    xb = x.astype(jnp.bfloat16)
    if Bpad != B:
        xb = jnp.pad(xb, ((0, Bpad - B), (0, 0)))

    grid = (Bpad // TB,)

    flops = 2 * Bpad * (D * H + H * GM + GM * Sout)
    transcendentals = Bpad * (H + GM)                   # erf evaluations
    bytes_accessed = (xb.size * 2 + ws.size * 2 + w1.size * 2 + w2.size * 2
                      + (bs.size + gamma.size + beta.size + b1.size + b2.size) * 4
                      + Bpad * Sout * 4)

    out = pl.pallas_call(
        fused_kernel,
        out_shape=jax.ShapeDtypeStruct((Bpad, Sout), jnp.float32),
        grid_spec=pltpu.PrefetchScalarGridSpec(
            num_scalar_prefetch=0,
            grid=grid,
            in_specs=[
                pl.BlockSpec((TB, D), lambda i: (i, 0)),   # x (streamed per tile)
                _const_spec((D, H)),                       # shared_w  (resident)
                _const_spec((1, H)),                       # shared_b
                _const_spec((1, H)),                       # ln_gamma
                _const_spec((1, H)),                       # ln_beta
                _const_spec((H, GM)),                      # W1_all  [H, G*M]
                _const_spec((1, GM)),                      # b1_all
                _const_spec((GM, Sout)),                   # W2_blk  [G*M, Sout]
                _const_spec((1, Sout)),                    # b2_packed
            ],
            out_specs=pl.BlockSpec((TB, Sout), lambda i: (i, 0)),
        ),
        compiler_params=pltpu.CompilerParams(
            dimension_semantics=("parallel",),
            vmem_limit_bytes=_vmem_limit_bytes(),
        ),
        cost_estimate=pl.CostEstimate(
            flops=flops,
            transcendentals=transcendentals,
            bytes_accessed=bytes_accessed,
        ),
    )(xb, ws, bs, gamma, beta, w1, b1, w2, b2)
    return out[:B]


# ----------------------------------------------------------------------------
# Module: parameter construction (packed layouts) + forward
# ----------------------------------------------------------------------------
def init_params(key, input_dim, group_sizes):
    H = input_dim // 2
    M = input_dim // 4
    names = tuple(group_sizes)
    sizes = tuple(group_sizes[n] for n in names)
    G = len(names)

    offsets, off = [], 0
    for s in sizes:
        offsets.append(off)
        off += s
    total = off
    Sout = _round_up(max(total, 1), 128)    # packed, lane-dense output slab

    keys = jax.random.split(key, 1 + 2 * G)

    def linear(k, fan_in, fan_out):
        bound = 1.0 / math.sqrt(fan_in)
        kw, kb = jax.random.split(k)
        w = jax.random.uniform(kw, (fan_in, fan_out), jnp.float32, -bound, bound)
        b = jax.random.uniform(kb, (1, fan_out), jnp.float32, -bound, bound)
        return w, b

    ws, bs = linear(keys[0], input_dim, H)

    # Pack all group heads: W1 concatenated along N, W2 block-diagonal into the
    # packed output slab (zeros elsewhere), biases packed at the same offsets.
    w1_all = jnp.zeros((H, G * M), jnp.float32)
    b1_all = jnp.zeros((1, G * M), jnp.float32)
    w2_blk = jnp.zeros((G * M, Sout), jnp.float32)
    b2_pck = jnp.zeros((1, Sout), jnp.float32)
    for g, size in enumerate(sizes):
        w1, b1 = linear(keys[1 + 2 * g], H, M)
        w2, b2 = linear(keys[2 + 2 * g], M, size)
        w1_all = w1_all.at[:, g * M:(g + 1) * M].set(w1)
        b1_all = b1_all.at[:, g * M:(g + 1) * M].set(b1)
        w2_blk = w2_blk.at[g * M:(g + 1) * M, offsets[g]:offsets[g] + size].set(w2)
        b2_pck = b2_pck.at[:, offsets[g]:offsets[g] + size].set(b2)

    params = {
        # Weights bf16 (MXU-native operands), biases / LN params f32.
        "shared_w": ws.astype(jnp.bfloat16),             # [D, H]
        "shared_b": bs,                                   # [1, H]
        "ln_gamma": jnp.ones((1, H), jnp.float32),
        "ln_beta": jnp.zeros((1, H), jnp.float32),
        "w1": w1_all.astype(jnp.bfloat16),                # [H, G*M]
        "b1": b1_all,                                     # [1, G*M]
        "w2": w2_blk.astype(jnp.bfloat16),                # [G*M, Sout]
        "b2": b2_pck,                                     # [1, Sout]
    }
    meta = {"names": names, "sizes": sizes, "offsets": tuple(offsets),
            "Sout": Sout, "H": H, "M": M, "G": G}
    return params, meta


def make_forward(meta, *, tb_max=256):
    names, sizes, offsets = meta["names"], meta["sizes"], meta["offsets"]

    @jax.jit
    def forward(x, params):
        flat = fused_forward(
            x,
            params["shared_w"], params["shared_b"],
            params["ln_gamma"], params["ln_beta"],
            params["w1"], params["b1"], params["w2"], params["b2"],
            tb_max=tb_max,
        )
        return {name: flat[:, off:off + size]
                for name, size, off in zip(names, sizes, offsets)}

    return forward


# ----------------------------------------------------------------------------
# Pure-JAX reference (same bf16-operand / f32-accumulation numerics),
# built from slices of the packed weights so it also checks the packing.
# ----------------------------------------------------------------------------
def reference(x, params, meta):
    names, sizes, offsets, M = meta["names"], meta["sizes"], meta["offsets"], meta["M"]
    xb = x.astype(jnp.bfloat16)
    h = jnp.dot(xb, params["shared_w"], preferred_element_type=jnp.float32)
    h = h + params["shared_b"]
    mu = jnp.mean(h, axis=-1, keepdims=True)
    var = jnp.mean((h - mu) ** 2, axis=-1, keepdims=True)
    hn = (h - mu) / jnp.sqrt(var + 1e-5)
    hn = hn * params["ln_gamma"] + params["ln_beta"]
    shared = jax.nn.gelu(hn, approximate=False).astype(jnp.bfloat16)
    out = {}
    for g, (name, size, off) in enumerate(zip(names, sizes, offsets)):
        w1_g = params["w1"][:, g * M:(g + 1) * M]
        b1_g = params["b1"][:, g * M:(g + 1) * M]
        w2_g = params["w2"][g * M:(g + 1) * M, off:off + size]
        b2_g = params["b2"][:, off:off + size]
        h1 = jnp.dot(shared, w1_g, preferred_element_type=jnp.float32) + b1_g
        h1 = jax.nn.gelu(h1, approximate=False).astype(jnp.bfloat16)
        out[name] = jnp.dot(h1, w2_g, preferred_element_type=jnp.float32) + b2_g
    return out


if __name__ == "__main__":
    key = jax.random.PRNGKey(0)
    k_x, k_p = jax.random.split(key)

    batch = 8
    input_dim = 32                      # -> hidden 16, mid 8
    group_sizes = {"color": 5, "material": 3, "shape": 7}

    x = jax.random.normal(k_x, (batch, input_dim), jnp.float32)
    params, meta = init_params(k_p, input_dim, group_sizes)
    forward = make_forward(meta)

    out = forward(x, params)
    out = jax.tree_util.tree_map(jax.block_until_ready, out)

    ref = reference(x, params, meta)
    for name, size in zip(meta["names"], meta["sizes"]):
        assert out[name].shape == (batch, size), name
        assert jnp.allclose(out[name], ref[name], atol=2e-3, rtol=2e-3), name

    print("KERNEL_OK")
</pallas_src>

<mosaic_0001>
module attributes {stable_mosaic.version = 11 : i64} {
  func.func @fused_kernel(%arg0: i32, %arg1: memref<16x32xbf16, #tpu.memory_space<vmem>>, %arg2: memref<32x16xbf16, #tpu.memory_space<vmem>>, %arg3: memref<1x16xf32, #tpu.memory_space<vmem>>, %arg4: memref<1x16xf32, #tpu.memory_space<vmem>>, %arg5: memref<1x16xf32, #tpu.memory_space<vmem>>, %arg6: memref<16x24xbf16, #tpu.memory_space<vmem>>, %arg7: memref<1x24xf32, #tpu.memory_space<vmem>>, %arg8: memref<24x128xbf16, #tpu.memory_space<vmem>>, %arg9: memref<1x128xf32, #tpu.memory_space<vmem>>, %arg10: memref<16x128xf32, #tpu.memory_space<vmem>>) attributes {dimension_semantics = [#tpu.dimension_semantics<parallel>], iteration_bounds = array<i64: 1>, scalar_prefetch = 0 : i64, scratch_operands = 0 : i64, tpu.core_type = #tpu.core_type<tc>, window_params = [{transform_indices = @transform_0, window_bounds = array<i64: 16, 32>}, {pipeline_mode = #tpu.pipeline_mode<synchronous>, transform_indices = @transform_1, window_bounds = array<i64: 32, 16>}, {pipeline_mode = #tpu.pipeline_mode<synchronous>, transform_indices = @transform_2, window_bounds = array<i64: 1, 16>}, {pipeline_mode = #tpu.pipeline_mode<synchronous>, transform_indices = @transform_3, window_bounds = array<i64: 1, 16>}, {pipeline_mode = #tpu.pipeline_mode<synchronous>, transform_indices = @transform_4, window_bounds = array<i64: 1, 16>}, {pipeline_mode = #tpu.pipeline_mode<synchronous>, transform_indices = @transform_5, window_bounds = array<i64: 16, 24>}, {pipeline_mode = #tpu.pipeline_mode<synchronous>, transform_indices = @transform_6, window_bounds = array<i64: 1, 24>}, {pipeline_mode = #tpu.pipeline_mode<synchronous>, transform_indices = @transform_7, window_bounds = array<i64: 24, 128>}, {pipeline_mode = #tpu.pipeline_mode<synchronous>, transform_indices = @transform_8, window_bounds = array<i64: 1, 128>}, {transform_indices = @transform_9, window_bounds = array<i64: 16, 128>}]} {
    %c0 = arith.constant 0 : index
    %c0_0 = arith.constant 0 : index
    %0 = vector.load %arg1[%c0, %c0_0] : memref<16x32xbf16, #tpu.memory_space<vmem>>, vector<16x32xbf16>
    %c0_1 = arith.constant 0 : index
    %c0_2 = arith.constant 0 : index
    %1 = vector.load %arg2[%c0_1, %c0_2] : memref<32x16xbf16, #tpu.memory_space<vmem>>, vector<32x16xbf16>
    %cst = arith.constant dense<0.000000e+00> : vector<16x16xf32>
    %2 = tpu.matmul %0, %1, %cst {dimension_numbers = #tpu.dot_dimension_numbers<[1], [0], [0], [1], [0, 0, 1, 1], [], []>} : vector<16x32xbf16>, vector<32x16xbf16>, vector<16x16xf32> -> vector<16x16xf32>
    %c0_3 = arith.constant 0 : index
    %c0_4 = arith.constant 0 : index
    %3 = vector.load %arg3[%c0_3, %c0_4] : memref<1x16xf32, #tpu.memory_space<vmem>>, vector<1x16xf32>
    %4 = vector.broadcast %3 : vector<1x16xf32> to vector<16x16xf32>
    %5 = arith.addf %2, %4 : vector<16x16xf32>
    %cst_5 = arith.constant dense<0.000000e+00> : vector<16xf32>
    %6 = vector.multi_reduction <add>, %5, %cst_5 [1] : vector<16x16xf32> to vector<16xf32>
    %7 = vector.shape_cast %6 : vector<16xf32> to vector<16x1xf32>
    %cst_6 = arith.constant 1.600000e+01 : f32
    %8 = vector.broadcast %cst_6 : f32 to vector<16x1xf32>
    %9 = arith.divf %7, %8 : vector<16x1xf32>
    %10 = vector.broadcast %9 : vector<16x1xf32> to vector<16x16xf32>
    %11 = arith.subf %5, %10 : vector<16x16xf32>
    %12 = vector.broadcast %9 : vector<16x1xf32> to vector<16x16xf32>
    %13 = arith.subf %5, %12 : vector<16x16xf32>
    %14 = arith.mulf %11, %13 : vector<16x16xf32>
    %cst_7 = arith.constant dense<0.000000e+00> : vector<16xf32>
    %15 = vector.multi_reduction <add>, %14, %cst_7 [1] : vector<16x16xf32> to vector<16xf32>
    %16 = vector.shape_cast %15 : vector<16xf32> to vector<16x1xf32>
    %cst_8 = arith.constant 1.600000e+01 : f32
    %17 = vector.broadcast %cst_8 : f32 to vector<16x1xf32>
    %18 = arith.divf %16, %17 : vector<16x1xf32>
    %19 = vector.broadcast %9 : vector<16x1xf32> to vector<16x16xf32>
    %20 = arith.subf %5, %19 : vector<16x16xf32>
    %cst_9 = arith.constant 9.99999974E-6 : f32
    %21 = vector.broadcast %cst_9 : f32 to vector<16x1xf32>
    %22 = arith.addf %18, %21 : vector<16x1xf32>
    %23 = math.rsqrt %22 : vector<16x1xf32>
    %24 = vector.broadcast %23 : vector<16x1xf32> to vector<16x16xf32>
    %25 = arith.mulf %20, %24 : vector<16x16xf32>
    %c0_10 = arith.constant 0 : index
    %c0_11 = arith.constant 0 : index
    %26 = vector.load %arg4[%c0_10, %c0_11] : memref<1x16xf32, #tpu.memory_space<vmem>>, vector<1x16xf32>
    %27 = vector.broadcast %26 : vector<1x16xf32> to vector<16x16xf32>
    %28 = arith.mulf %25, %27 : vector<16x16xf32>
    %c0_12 = arith.constant 0 : index
    %c0_13 = arith.constant 0 : index
    %29 = vector.load %arg5[%c0_12, %c0_13] : memref<1x16xf32, #tpu.memory_space<vmem>>, vector<1x16xf32>
    %30 = vector.broadcast %29 : vector<1x16xf32> to vector<16x16xf32>
    %31 = arith.addf %28, %30 : vector<16x16xf32>
    %cst_14 = arith.constant 5.000000e-01 : f32
    %32 = vector.broadcast %cst_14 : f32 to vector<16x16xf32>
    %33 = arith.mulf %32, %31 : vector<16x16xf32>
    %cst_15 = arith.constant 0.707106769 : f32
    %34 = vector.broadcast %cst_15 : f32 to vector<16x16xf32>
    %35 = arith.mulf %31, %34 : vector<16x16xf32>
    %36 = math.erf %35 : vector<16x16xf32>
    %cst_16 = arith.constant 1.000000e+00 : f32
    %37 = vector.broadcast %cst_16 : f32 to vector<16x16xf32>
    %38 = arith.addf %37, %36 : vector<16x16xf32>
    %39 = arith.mulf %33, %38 : vector<16x16xf32>
    %40 = arith.truncf %39 : vector<16x16xf32> to vector<16x16xbf16>
    %c0_17 = arith.constant 0 : index
    %c0_18 = arith.constant 0 : index
    %41 = vector.load %arg6[%c0_17, %c0_18] : memref<16x24xbf16, #tpu.memory_space<vmem>>, vector<16x24xbf16>
    %cst_19 = arith.constant dense<0.000000e+00> : vector<16x24xf32>
    %42 = tpu.matmul %40, %41, %cst_19 {dimension_numbers = #tpu.dot_dimension_numbers<[1], [0], [0], [1], [0, 0, 1, 1], [], []>} : vector<16x16xbf16>, vector<16x24xbf16>, vector<16x24xf32> -> vector<16x24xf32>
    %c0_20 = arith.constant 0 : index
    %c0_21 = arith.constant 0 : index
    %43 = vector.load %arg7[%c0_20, %c0_21] : memref<1x24xf32, #tpu.memory_space<vmem>>, vector<1x24xf32>
    %44 = vector.broadcast %43 : vector<1x24xf32> to vector<16x24xf32>
    %45 = arith.addf %42, %44 : vector<16x24xf32>
    %cst_22 = arith.constant 5.000000e-01 : f32
    %46 = vector.broadcast %cst_22 : f32 to vector<16x24xf32>
    %47 = arith.mulf %46, %45 : vector<16x24xf32>
    %cst_23 = arith.constant 0.707106769 : f32
    %48 = vector.broadcast %cst_23 : f32 to vector<16x24xf32>
    %49 = arith.mulf %45, %48 : vector<16x24xf32>
    %50 = math.erf %49 : vector<16x24xf32>
    %cst_24 = arith.constant 1.000000e+00 : f32
    %51 = vector.broadcast %cst_24 : f32 to vector<16x24xf32>
    %52 = arith.addf %51, %50 : vector<16x24xf32>
    %53 = arith.mulf %47, %52 : vector<16x24xf32>
    %54 = arith.truncf %53 : vector<16x24xf32> to vector<16x24xbf16>
    %c0_25 = arith.constant 0 : index
    %c0_26 = arith.constant 0 : index
    %55 = vector.load %arg8[%c0_25, %c0_26] : memref<24x128xbf16, #tpu.memory_space<vmem>>, vector<24x128xbf16>
    %cst_27 = arith.constant dense<0.000000e+00> : vector<16x128xf32>
    %56 = tpu.matmul %54, %55, %cst_27 {dimension_numbers = #tpu.dot_dimension_numbers<[1], [0], [0], [1], [0, 0, 1, 1], [], []>} : vector<16x24xbf16>, vector<24x128xbf16>, vector<16x128xf32> -> vector<16x128xf32>
    %c0_28 = arith.constant 0 : index
    %c0_29 = arith.constant 0 : index
    %57 = vector.load %arg9[%c0_28, %c0_29] : memref<1x128xf32, #tpu.memory_space<vmem>>, vector<1x128xf32>
    %58 = vector.broadcast %57 : vector<1x128xf32> to vector<16x128xf32>
    %59 = arith.addf %56, %58 : vector<16x128xf32>
    %c0_30 = arith.constant 0 : index
    %c0_31 = arith.constant 0 : index
    %60 = vector.load %arg10[%c0_30, %c0_31] : memref<16x128xf32, #tpu.memory_space<vmem>>, vector<16x128xf32>
    tpu.vector_store %arg10[%c0_30, %c0_31], %59 {strides = array<i32>} : memref<16x128xf32, #tpu.memory_space<vmem>>, vector<16x128xf32>,
    return
  }
  func.func @transform_0(%arg0: i32) -> (i32, i32) {
    %c0_i32 = arith.constant 0 : i32
    %c0_i32_0 = arith.constant 0 : i32
    return %arg0, %c0_i32 : i32, i32
  }
  func.func @transform_1(%arg0: i32) -> (i32, i32) {
    %c0_i32 = arith.constant 0 : i32
    %c0_i32_0 = arith.constant 0 : i32
    %c0_i32_1 = arith.constant 0 : i32
    return %c0_i32, %c0_i32_0 : i32, i32
  }
  func.func @transform_2(%arg0: i32) -> (i32, i32) {
    %c0_i32 = arith.constant 0 : i32
    %c0_i32_0 = arith.constant 0 : i32
    %c0_i32_1 = arith.constant 0 : i32
    return %c0_i32, %c0_i32_0 : i32, i32
  }
  func.func @transform_3(%arg0: i32) -> (i32, i32) {
    %c0_i32 = arith.constant 0 : i32
    %c0_i32_0 = arith.constant 0 : i32
    %c0_i32_1 = arith.constant 0 : i32
    return %c0_i32, %c0_i32_0 : i32, i32
  }
  func.func @transform_4(%arg0: i32) -> (i32, i32) {
    %c0_i32 = arith.constant 0 : i32
    %c0_i32_0 = arith.constant 0 : i32
    %c0_i32_1 = arith.constant 0 : i32
    return %c0_i32, %c0_i32_0 : i32, i32
  }
  func.func @transform_5(%arg0: i32) -> (i32, i32) {
    %c0_i32 = arith.constant 0 : i32
    %c0_i32_0 = arith.constant 0 : i32
    %c0_i32_1 = arith.constant 0 : i32
    return %c0_i32, %c0_i32_0 : i32, i32
  }
  func.func @transform_6(%arg0: i32) -> (i32, i32) {
    %c0_i32 = arith.constant 0 : i32
    %c0_i32_0 = arith.constant 0 : i32
    %c0_i32_1 = arith.constant 0 : i32
    return %c0_i32, %c0_i32_0 : i32, i32
  }
  func.func @transform_7(%arg0: i32) -> (i32, i32) {
    %c0_i32 = arith.constant 0 : i32
    %c0_i32_0 = arith.constant 0 : i32
    %c0_i32_1 = arith.constant 0 : i32
    return %c0_i32, %c0_i32_0 : i32, i32
  }
  func.func @transform_8(%arg0: i32) -> (i32, i32) {
    %c0_i32 = arith.constant 0 : i32
    %c0_i32_0 = arith.constant 0 : i32
    %c0_i32_1 = arith.constant 0 : i32
    return %c0_i32, %c0_i32_0 : i32, i32
  }
  func.func @transform_9(%arg0: i32) -> (i32, i32) {
    %c0_i32 = arith.constant 0 : i32
    %c0_i32_0 = arith.constant 0 : i32
    return %arg0, %c0_i32 : i32, i32
  }
}

</mosaic_0001>

<llo_original>
// kernel: forward.1
$region0: #{forward.1}
  #allocation0 [shape = 'u32[]', space=smem, size = 0x4, offset = 0x4, fixed_abs, tag = 'smem constant byte address 0x4 - core index']
  #allocation1 [shape = 'u32[144,128]{1,0:T(1,128)}', space=vmem, size = 0x12000, scoped, tag = 'internal scratch']
  %s0 = inlined_call_operand.vmem [shape: bf16[16,32], index: 0, kind: input, shape index: {}]
  %s1 = inlined_call_operand.vmem [shape: bf16[32,16], index: 1, kind: input, shape index: {}]
  %s2 = inlined_call_operand.vmem [shape: f32[1,16], index: 2, kind: input, shape index: {}]
  %s3 = inlined_call_operand.vmem [shape: f32[1,16], index: 3, kind: input, shape index: {}]
  %s4 = inlined_call_operand.vmem [shape: f32[1,16], index: 4, kind: input, shape index: {}]
  %s5 = inlined_call_operand.vmem [shape: bf16[16,24], index: 5, kind: input, shape index: {}]
  %s6 = inlined_call_operand.vmem [shape: f32[1,24], index: 6, kind: input, shape index: {}]
  %s7 = inlined_call_operand.vmem [shape: bf16[24,128], index: 7, kind: input, shape index: {}]
  %s8 = inlined_call_operand.vmem [shape: f32[1,128], index: 8, kind: input, shape index: {}]
  %s9 = inlined_call_operand.vmem [shape: f32[16,128], index: 9, kind: output, shape index: {}]
  %s10 = sld [smem:[#allocation0]]
  $region46: #{forward.1} parent=0
    _
  %s12 = ssub.s32 1, %s10
  %s13 = scalar_select 0, %s12, %s10
  // Predicated region
  $region2: #{forward.1} parent=0 // pred_check
    _
  $region3: #{forward.1} parent=0 // pred_check_branch
    %15 = sbr.rel (0) target = $region5
  $region4: #{forward.1} parent=0 // pred_region
    _
  $region5: #{forward.1} parent=0 // pred_fallthru
    _
  // Predicated region
  $region6: #{forward.1} parent=0 // pred_check
    _
  $region7: #{forward.1} parent=0 // pred_check_branch
    %17 = sbr.rel (0) target = $region9
  $region8: #{forward.1} parent=0 // pred_region
    _
  $region9: #{forward.1} parent=0 // pred_fallthru
    _
  // Predicated region
  $region10: #{forward.1} parent=0 // pred_check
    _
  $region11: #{forward.1} parent=0 // pred_check_branch
    %19 = sbr.rel (0) target = $region13
  $region12: #{forward.1} parent=0 // pred_region
    _
  $region13: #{forward.1} parent=0 // pred_fallthru
    _
  // Predicated region
  $region14: #{forward.1} parent=0 // pred_check
    _
  $region15: #{forward.1} parent=0 // pred_check_branch
    %21 = sbr.rel (0) target = $region17
  $region16: #{forward.1} parent=0 // pred_region
    _
  $region17: #{forward.1} parent=0 // pred_fallthru
    _
  // Predicated region
  $region18: #{forward.1} parent=0 // pred_check
    _
  $region19: #{forward.1} parent=0 // pred_check_branch
    %23 = sbr.rel (0) target = $region21
  $region20: #{forward.1} parent=0 // pred_region
    _
  $region21: #{forward.1} parent=0 // pred_fallthru
    _
  // Predicated region
  $region22: #{forward.1} parent=0 // pred_check
    _
  $region23: #{forward.1} parent=0 // pred_check_branch
    %25 = sbr.rel (0) target = $region25
  $region24: #{forward.1} parent=0 // pred_region
    _
  $region25: #{forward.1} parent=0 // pred_fallthru
    _
  // Predicated region
  $region26: #{forward.1} parent=0 // pred_check
    _
  $region27: #{forward.1} parent=0 // pred_check_branch
    %27 = sbr.rel (0) target = $region29
  $region28: #{forward.1} parent=0 // pred_region
    _
  $region29: #{forward.1} parent=0 // pred_fallthru
    _
  // Predicated region
  $region30: #{forward.1} parent=0 // pred_check
    _
  $region31: #{forward.1} parent=0 // pred_check_branch
    %29 = sbr.rel (0) target = $region33
  $region32: #{forward.1} parent=0 // pred_region
    _
  $region33: #{forward.1} parent=0 // pred_fallthru
    _
  // Predicated region
  $region34: #{forward.1} parent=0 // pred_check
    _
  $region35: #{forward.1} parent=0 // pred_check_branch
    %31 = sbr.rel (0) target = $region37
  $region36: #{forward.1} parent=0 // pred_region
    _
  $region37: #{forward.1} parent=0 // pred_fallthru
    _
  %v33 = vld [vmem:[%s0] sm:$0xf]
  %v34 = vld [vmem:[%s0 + $0x4] sm:$0xf]
  %v35 = vld [vmem:[%s1] sm:$0xf]
  %v36 = vld [vmem:[%s1 + $0x4] sm:$0xf]
  %v37 = vld [vmem:[%s1 + $0x8] sm:$0xf]
  %v38 = vld [vmem:[%s1 + $0xc] sm:$0xf]
  %v39 = vld [vmem:[%s2] sm:$0x1]
  %v41 = vlaneseq
  %v42 = vshrl.u32 %v41, 7
  %v43 = vsub.s32 0, %v42
  %v44 = vrot.slane %v39, %v43
  %v48 = vunpack.c.l.b16 %v33
  %v49 = vunpack.c.l.b16 %v34
  %v50 = vpack.c.b16 %v49, %v48
  %v55 = vunpack.c.l.b16 %v35
  %v56 = vunpack.c.l.b16 %v36
  %v57 = vunpack.c.l.b16 %v37
  %v58 = vunpack.c.l.b16 %v38
  %v59 = vpack.c.b16 %v56, %v55
  %v60 = vpack.c.b16 %v58, %v57
  %vm63 = vcmask 261120
  %v65 = vsel %vm63, %v50, 0
  %67 = vmatprep.subr.bf16.mxu0 0
  %68 = vmatpush1.bf16.msra.mxu0 %v59
  %69 = vmatprep.subr.bf16.mxu0 0
  %70 = vmatpush1.bf16.msra.mxu0 %v60
  %71 = vmatprep.subr.bf16.mxu0 0
  %72 = vmatpush1.bf16.msra.mxu0 0
  %73 = vmatprep.subr.bf16.mxu0 0
  %74 = vmatpush1.bf16.msra.mxu0 0
  %75 = vmatprep.subr.bf16.mxu0 0
  %76 = vmatpush1.bf16.msra.mxu0 0
  %77 = vmatprep.subr.bf16.mxu0 0
  %78 = vmatpush1.bf16.msra.mxu0 0
  %79 = vmatprep.subr.bf16.mxu0 0
  %80 = vmatpush1.bf16.msra.mxu0 0
  %81 = vmatprep.subr.bf16.mxu0 0
  %82 = vmatpush1.bf16.msra.mxu0 0
  %83 = vmatprep.subr.bf16.mxu0 0
  %84 = vmatpush1.bf16.msra.mxu0 0
  %85 = vmatprep.subr.bf16.mxu0 0
  %86 = vmatpush1.bf16.msra.mxu0 0
  %87 = vmatprep.subr.bf16.mxu0 0
  %88 = vmatpush1.bf16.msra.mxu0 0
  %89 = vmatprep.subr.bf16.mxu0 0
  %90 = vmatpush1.bf16.msra.mxu0 0
  %91 = vmatprep.subr.bf16.mxu0 0
  %92 = vmatpush1.bf16.msra.mxu0 0
  %93 = vmatprep.subr.bf16.mxu0 0
  %94 = vmatpush1.bf16.msra.mxu0 0
  %95 = vmatprep.subr.bf16.mxu0 0
  %96 = vmatpush1.bf16.msra.mxu0 0
  %97 = vmatprep.subr.bf16.mxu0 0
  %98 = vmatpush1.bf16.msra.mxu0 0
  %99 = vmatprep.mubr.bf16.mxu0 0
  %100 = vmatmul.mubr.bf16.gmra.mrb[0].mxu0 %v65
  %v101 = vpop.f32.mrb[0].mxu0
  %v102 = vadd.f32 %v44, %v101
  %v103 = vpop.f32.mrb[0].mxu0
  %v104 = vpop.f32.mrb[0].mxu0
  %v105 = vadd.f32 %v44, %v104
  %v106 = vpop.f32.mrb[0].mxu0
  %107 = vdwg.mxu0
  %vm108 = vcmask 130048
  %v109 = vsel %vm108, %v102, 0.0
  %110 = vadd.xlane.f32.xlu0 %v109
  %v111 = vpop.xlane.xlu0 %110
  %v112 = vsel %vm108, %v105, 0.0
  %113 = vadd.xlane.f32.xlu0 %v112
  %v114 = vpop.xlane.xlu0 %113
  %v115 = vrcp.pop 16.0
  %v116 = vmul.f32 %v111, %v115
  %v117 = vmul.f32 %v114, %v115
  %v118 = vsub.f32 %v102, %v116
  %v119 = vsub.f32 %v105, %v117
  %v120 = vmul.f32 %v118, %v118
  %v121 = vmul.f32 %v119, %v119
  %v122 = vsel %vm108, %v120, 0.0
  %123 = vadd.xlane.f32.xlu0 %v122
  %v124 = vpop.xlane.xlu0 %123
  %v125 = vsel %vm108, %v121, 0.0
  %126 = vadd.xlane.f32.xlu0 %v125
  %v127 = vpop.xlane.xlu0 %126
  %v128 = vmul.f32 %v124, %v115
  %v129 = vmul.f32 %v127, %v115
  %v130 = vadd.f32 %v128, 1e-05
  %v131 = vadd.f32 %v129, 1e-05
  %v132 = vrsqrt.pop %v130
  %v133 = vrsqrt.pop %v131
  %v134 = vmul.f32 %v118, %v132
  %v135 = vmul.f32 %v119, %v133
  %v136 = vld [vmem:[%s3] sm:$0x1]
  %v138 = vlaneseq
  %v139 = vshrl.u32 %v138, 7
  %v140 = vsub.s32 0, %v139
  %v141 = vrot.slane %v136, %v140
  %v143 = vmul.f32 %v134, %v141
  %v144 = vmul.f32 %v135, %v141
  %v145 = vld [vmem:[%s4] sm:$0x1]
  %v147 = vlaneseq
  %v148 = vshrl.u32 %v147, 7
  %v149 = vsub.s32 0, %v148
  %v150 = vrot.slane %v145, %v149
  %v152 = vadd.f32 %v143, %v150
  %v153 = vadd.f32 %v144, %v150
  %v154 = vmul.f32 %v152, 0.5
  %v155 = vmul.f32 %v153, 0.5
  %v156 = vmul.f32 %v152, 0.70710677
  %v157 = vmul.f32 %v153, 0.70710677
  %v158 = verf.f32.pop %v156
  %v159 = verf.f32.pop %v157
  %v160 = vadd.f32 %v158, 1.0
  %v161 = vadd.f32 %v159, 1.0
  %v162 = vmul.f32 %v154, %v160
  %v163 = vmul.f32 %v155, %v161
  %v164 = vpack.c.bf16 %v163, %v162
  %v165 = vld [vmem:[%s5] sm:$0xf]
  %v166 = vld [vmem:[%s5 + $0x4] sm:$0xf]
  %v167 = vld [vmem:[%s6] sm:$0x1]
  %v169 = vlaneseq
  %v170 = vshrl.u32 %v169, 7
  %v171 = vsub.s32 0, %v170
  %v172 = vrot.slane %v167, %v171
  %v176 = vunpack.c.l.b16 %v165
  %v177 = vunpack.c.l.b16 %v166
  %v178 = vpack.c.b16 %v177, %v176
  %v181 = vsel %vm108, %v164, 0
  %183 = vmatprep.subr.bf16.mxu0 0
  %184 = vmatpush1.bf16.msra.mxu0 %v178
  %185 = vmatprep.subr.bf16.mxu0 0
  %186 = vmatpush1.bf16.msra.mxu0 0
  %187 = vmatprep.subr.bf16.mxu0 0
  %188 = vmatpush1.bf16.msra.mxu0 0
  %189 = vmatprep.subr.bf16.mxu0 0
  %190 = vmatpush1.bf16.msra.mxu0 0
  %191 = vmatprep.subr.bf16.mxu0 0
  %192 = vmatpush1.bf16.msra.mxu0 0
  %193 = vmatprep.subr.bf16.mxu0 0
  %194 = vmatpush1.bf16.msra.mxu0 0
  %195 = vmatprep.subr.bf16.mxu0 0
  %196 = vmatpush1.bf16.msra.mxu0 0
  %197 = vmatprep.subr.bf16.mxu0 0
  %198 = vmatpush1.bf16.msra.mxu0 0
  %199 = vmatprep.subr.bf16.mxu0 0
  %200 = vmatpush1.bf16.msra.mxu0 0
  %201 = vmatprep.subr.bf16.mxu0 0
  %202 = vmatpush1.bf16.msra.mxu0 0
  %203 = vmatprep.subr.bf16.mxu0 0
  %204 = vmatpush1.bf16.msra.mxu0 0
  %205 = vmatprep.subr.bf16.mxu0 0
  %206 = vmatpush1.bf16.msra.mxu0 0
  %207 = vmatprep.subr.bf16.mxu0 0
  %208 = vmatpush1.bf16.msra.mxu0 0
  %209 = vmatprep.subr.bf16.mxu0 0
  %210 = vmatpush1.bf16.msra.mxu0 0
  %211 = vmatprep.subr.bf16.mxu0 0
  %212 = vmatpush1.bf16.msra.mxu0 0
  %213 = vmatprep.subr.bf16.mxu0 0
  %214 = vmatpush1.bf16.msra.mxu0 0
  %215 = vmatprep.mubr.bf16.mxu0 0
  %216 = vmatmul.mubr.bf16.gmra.mrb[0].mxu0 %v181
  %v217 = vpop.f32.mrb[0].mxu0
  %v218 = vadd.f32 %v172, %v217
  %v219 = vpop.f32.mrb[0].mxu0
  %v220 = vpop.f32.mrb[0].mxu0
  %v221 = vadd.f32 %v172, %v220
  %v222 = vpop.f32.mrb[0].mxu0
  %223 = vdwg.mxu0
  %v224 = vmul.f32 %v218, 0.5
  %v225 = vmul.f32 %v221, 0.5
  %v226 = vmul.f32 %v218, 0.70710677
  %v227 = vmul.f32 %v221, 0.70710677
  %v228 = verf.f32.pop %v226
  %v229 = verf.f32.pop %v227
  %v230 = vadd.f32 %v228, 1.0
  %v231 = vadd.f32 %v229, 1.0
  %v232 = vmul.f32 %v224, %v230
  %v233 = vmul.f32 %v225, %v231
  %v234 = vpack.c.bf16 %v233, %v232
  %v235 = vld [vmem:[%s7] sm:$0xf]
  %v236 = vld [vmem:[%s7 + $0x4] sm:$0xf]
  %v237 = vld [vmem:[%s7 + $0x8] sm:$0xf]
  %v238 = vld [vmem:[%s8] sm:$0x1]
  %v240 = vlaneseq
  %v241 = vshrl.u32 %v240, 7
  %v242 = vsub.s32 0, %v241
  %v243 = vrot.slane %v238, %v242
  %v248 = vunpack.c.l.b16 %v235
  %v249 = vunpack.c.l.b16 %v236
  %v250 = vunpack.c.l.b16 %v237
  %v251 = vpack.c.b16 %v249, %v248
  %v252 = vpack.c.b16 %v250, %v250
  %vm254 = vcmask 195584
  %v256 = vsel %vm254, %v234, 0
  %vm258 = vcmask 1043456
  %v260 = vsel %vm258, %v252, 0
  %262 = vmatprep.subr.bf16.mxu0 0
  %263 = vmatpush1.bf16.msra.mxu0 %v251
  %264 = vmatprep.subr.bf16.mxu0 0
  %265 = vmatpush1.bf16.msra.mxu0 %v260
  %266 = vmatprep.subr.bf16.mxu0 0
  %267 = vmatpush1.bf16.msra.mxu0 0
  %268 = vmatprep.subr.bf16.mxu0 0
  %269 = vmatpush1.bf16.msra.mxu0 0
  %270 = vmatprep.subr.bf16.mxu0 0
  %271 = vmatpush1.bf16.msra.mxu0 0
  %272 = vmatprep.subr.bf16.mxu0 0
  %273 = vmatpush1.bf16.msra.mxu0 0
  %274 = vmatprep.subr.bf16.mxu0 0
  %275 = vmatpush1.bf16.msra.mxu0 0
  %276 = vmatprep.subr.bf16.mxu0 0
  %277 = vmatpush1.bf16.msra.mxu0 0
  %278 = vmatprep.subr.bf16.mxu0 0
  %279 = vmatpush1.bf16.msra.mxu0 0
  %280 = vmatprep.subr.bf16.mxu0 0
  %281 = vmatpush1.bf16.msra.mxu0 0
  %282 = vmatprep.subr.bf16.mxu0 0
  %283 = vmatpush1.bf16.msra.mxu0 0
  %284 = vmatprep.subr.bf16.mxu0 0
  %285 = vmatpush1.bf16.msra.mxu0 0
  %286 = vmatprep.subr.bf16.mxu0 0
  %287 = vmatpush1.bf16.msra.mxu0 0
  %288 = vmatprep.subr.bf16.mxu0 0
  %289 = vmatpush1.bf16.msra.mxu0 0
  %290 = vmatprep.subr.bf16.mxu0 0
  %291 = vmatpush1.bf16.msra.mxu0 0
  %292 = vmatprep.subr.bf16.mxu0 0
  %293 = vmatpush1.bf16.msra.mxu0 0
  %294 = vmatprep.mubr.bf16.mxu0 0
  %295 = vmatmul.mubr.bf16.gmra.mrb[0].mxu0 %v256
  %v296 = vpop.f32.mrb[0].mxu0
  %v297 = vadd.f32 %v243, %v296
  %v298 = vpop.f32.mrb[0].mxu0
  %v299 = vpop.f32.mrb[0].mxu0
  %v300 = vadd.f32 %v243, %v299
  %v301 = vpop.f32.mrb[0].mxu0
  %302 = vdwg.mxu0
  %303 = vst [vmem:[%s9] sm:$0xff] %v297
  %304 = vst [vmem:[%s9 + $0x8] sm:$0xff] %v300
  // Predicated region
  $region38: #{forward.1} parent=0 // pred_check
    _
  $region39: #{forward.1} parent=0 // pred_check_branch
    %306 = sbr.rel (0) target = $region41
  $region40: #{forward.1} parent=0 // pred_region
    _
  $region41: #{forward.1} parent=0 // pred_fallthru
    _
  // Predicated region
  $region42: #{forward.1} parent=0 // pred_check
    _
  $region43: #{forward.1} parent=0 // pred_check_branch
    %308 = sbr.rel (0) target = $region45
  $region44: #{forward.1} parent=0 // pred_region
    _
  $region45: #{forward.1} parent=0 // pred_fallthru
    _

</llo_original>
